<compile_context>
chip_gen: v6e
topology: v6e:2x2x1
jax: 0.10.0
libtpu: 0.0.40
codegen_flags: <defaults>
</compile_context>

<pallas_src>
import sys
import functools

import jax
import jax.numpy as jnp
from jax.experimental import pallas as pl
from jax.experimental.pallas import tpu as pltpu

EPS = sys.float_info.epsilon


def _pick_tile(total, target):
    """Largest multiple of 128 that divides `total` and is <= `target`, else `total`."""
    if total <= target:
        return total
    t = (target // 128) * 128
    while t >= 128:
        if total % t == 0:
            return t
        t -= 128
    return total


# ----------------------------------------------------------------------------
# Pallas kernel 1: lane-dense channel matmul (used for 3x3 im2col and 1x1 convs)
#   out[n, :, tile] = W(Cout, K) @ X[n, :, tile] + b
# ----------------------------------------------------------------------------
def _channel_matmul_kernel(w_ref, b_ref, x_ref, o_ref):
    o_ref[0] = (
        jnp.dot(w_ref[...], x_ref[0], preferred_element_type=jnp.float32)
        + b_ref[...]
    )


def pallas_channel_matmul(w, b, x, *, hw_tile_target=512):
    """w:(Cout,K), b:(Cout,), x:(N,K,HW) -> (N,Cout,HW) float32, lane-dense output."""
    cout, k = w.shape
    n, _, hw = x.shape
    t = _pick_tile(hw, hw_tile_target)
    b2 = b.reshape(cout, 1).astype(jnp.float32)
    return pl.pallas_call(
        _channel_matmul_kernel,
        out_shape=jax.ShapeDtypeStruct((n, cout, hw), jnp.float32),
        grid=(n, hw // t),
        in_specs=[
            pl.BlockSpec((cout, k), lambda bi, i: (0, 0)),
            pl.BlockSpec((cout, 1), lambda bi, i: (0, 0)),
            pl.BlockSpec((1, k, t), lambda bi, i: (bi, 0, i)),
        ],
        out_specs=pl.BlockSpec((1, cout, t), lambda bi, i: (bi, 0, i)),
        compiler_params=pltpu.CompilerParams(
            dimension_semantics=("parallel", "parallel")),
    )(w.astype(jnp.float32), b2, x.astype(jnp.float32))


# ----------------------------------------------------------------------------
# Pallas kernel 2: fused correlation softmax + warp (flash-attention style).
#   For a tile of tq query positions:
#     s = theta_tile(tq, C) @ phi(C, HW) / temp
#     p = softmax(s, axis=-1)                       (f32 stats, approx recip)
#     out(P, tq) = V(P, HW) . p^T                   (f32 accumulation)
#   The (HW x HW) correlation matrix never touches HBM.
# ----------------------------------------------------------------------------
def _fused_corr_warp_kernel(theta_ref, phi_ref, v_ref, o_ref, *, inv_temp):
    # theta_ref: (1, tq, C)  normalized query features (rows)
    # phi_ref:   (1, C, HW)  normalized reference features
    # v_ref:     (1, P, HW)  concatenated unfolded "values" (ref image + feats)
    # o_ref:     (1, P, tq)  warped values for this query tile
    s = jnp.dot(theta_ref[0], phi_ref[0], preferred_element_type=jnp.float32)
    s = s * inv_temp
    m = jnp.max(s, axis=-1, keepdims=True)
    e = jnp.exp(s - m)
    p = e * pl.reciprocal(jnp.sum(e, axis=-1, keepdims=True), approx=True)
    o_ref[0] = jnp.einsum(
        "pk,qk->pq", v_ref[0], p.astype(v_ref.dtype),
        preferred_element_type=jnp.float32)


def pallas_fused_corr_warp(theta_t, phi, v, temp, *, q_tile_target=256):
    """theta_t:(N,HW,C), phi:(N,C,HW), v:(N,P,HW) -> (N,P,HW) float32."""
    n, hw, c = theta_t.shape
    _, p_dim, _ = v.shape
    tq = _pick_tile(hw, q_tile_target)
    kernel = functools.partial(_fused_corr_warp_kernel, inv_temp=1.0 / float(temp))
    return pl.pallas_call(
        kernel,
        out_shape=jax.ShapeDtypeStruct((n, p_dim, hw), jnp.float32),
        grid=(n, hw // tq),
        in_specs=[
            pl.BlockSpec((1, tq, c), lambda b, i: (b, i, 0)),
            pl.BlockSpec((1, c, hw), lambda b, i: (b, 0, 0)),
            pl.BlockSpec((1, p_dim, hw), lambda b, i: (b, 0, 0)),
        ],
        out_specs=pl.BlockSpec((1, p_dim, tq), lambda b, i: (b, 0, i)),
        compiler_params=pltpu.CompilerParams(
            dimension_semantics=("parallel", "parallel")),
    )(theta_t.astype(jnp.bfloat16), phi.astype(jnp.bfloat16), v.astype(jnp.bfloat16))


# ----------------------------------------------------------------------------
# JAX glue (layout plumbing, norms, coords)
# ----------------------------------------------------------------------------
def conv2d_3x3(x, w, b):
    """ReflectionPad(1) + 3x3 valid conv (stride 1), NCHW, via channel matmul."""
    N, Cin, H, W = x.shape
    Cout = w.shape[0]
    xp = jnp.pad(x, ((0, 0), (0, 0), (1, 1), (1, 1)), mode="reflect")
    # TODO(synk): im2col patches are still materialized in HBM (9x inflation);
    # an in-kernel 3x3 tap-accumulation loop would cut conv-phase HBM traffic.
    patches = jnp.stack(
        [xp[:, :, ki:ki + H, kj:kj + W] for ki in range(3) for kj in range(3)],
        axis=2,
    )                                             # (N, Cin, 9, H, W)
    patches = patches.reshape(N, Cin * 9, H * W)  # lane-dense im2col, no transpose
    wmat = w.reshape(Cout, Cin * 9)
    out = pallas_channel_matmul(wmat, b, patches)  # (N, Cout, H*W)
    return out.reshape(N, Cout, H, W)


def conv2d_1x1(x, w, b):
    """1x1 conv, NCHW in -> (N, Cout, H*W) out (kept flat for the corr kernel)."""
    N, Cin, H, W = x.shape
    Cout = w.shape[0]
    xf = x.reshape(N, Cin, H * W)
    return pallas_channel_matmul(w.reshape(Cout, Cin), b, xf)


def instance_norm(x, eps=1e-5):
    mean = jnp.mean(x, axis=(2, 3), keepdims=True)
    var = jnp.mean((x - mean) ** 2, axis=(2, 3), keepdims=True)
    return (x - mean) / jnp.sqrt(var + eps)


def prelu(x, a):
    return jnp.where(x >= 0, x, a * x)


def residual_block(x, p):
    out = conv2d_3x3(x, p["w1"], p["b1"])
    out = instance_norm(out)
    out = prelu(out, p["a"])
    out = conv2d_3x3(out, p["w2"], p["b2"])
    out = instance_norm(out)
    out = out + x
    out = prelu(out, p["a"])
    return out


def feature_normalize(x):
    norm = jnp.sqrt(jnp.sum(x * x, axis=1, keepdims=True)) + EPS
    return x / norm


def addcoords(x):
    bs, _, h, w = x.shape
    xx = jnp.arange(w, dtype=x.dtype) / (w - 1)
    yy = jnp.arange(h, dtype=x.dtype) / (h - 1)
    xx_ch = jnp.broadcast_to(xx[None, None, None, :], (bs, 1, h, w)) * 2.0 - 1.0
    yy_ch = jnp.broadcast_to(yy[None, None, :, None], (bs, 1, h, w)) * 2.0 - 1.0
    rr_ch = jnp.sqrt(xx_ch ** 2 + yy_ch ** 2)
    return jnp.concatenate([x, xx_ch, yy_ch, rr_ch], axis=1)


def unfold_nonoverlap(x, s):
    """F.unfold(x, s, stride=s) for NCHW (non-overlapping patches)."""
    N, C, H, W = x.shape
    Hb, Wb = H // s, W // s
    x = x.reshape(N, C, Hb, s, Wb, s).transpose(0, 1, 3, 5, 2, 4)
    return x.reshape(N, C * s * s, Hb * Wb)


def fold_nonoverlap(x, out_hw, s):
    """F.fold(x, out_hw, s, stride=s) for non-overlapping patches."""
    N, CSS, _ = x.shape
    C = CSS // (s * s)
    Hb = out_hw // s
    Wb = out_hw // s
    x = x.reshape(N, C, s, s, Hb, Wb).transpose(0, 1, 4, 2, 5, 3)
    return x.reshape(N, C, out_hw, out_hw)


# ----------------------------------------------------------------------------
# CorrespondenceNet forward
# ----------------------------------------------------------------------------
def correspondence_forward(params, cfg, q, q_ref, ref, featnet, ref_biggan_feat):
    corr_out = {}
    # featnet is an external frozen feature extractor in the original code.
    q_feat = featnet(q, max_inference_depth=cfg["MAX_INFERENCE_DEPTH"])
    ref_feat = featnet(ref, max_inference_depth=cfg["MAX_INFERENCE_DEPTH"])

    q_feat = residual_block(q_feat, params["private0"])
    ref_feat = residual_block(ref_feat, params["private1"])
    q_feat = feature_normalize(q_feat)
    ref_feat = feature_normalize(ref_feat)
    corr_out["domain_align_loss"] = 0

    # Shared layers use identical weights for both streams: concatenate along the
    # batch axis so each conv is one larger pallas_call (less fixed overhead).
    n = q_feat.shape[0]
    both = jnp.concatenate([q_feat, ref_feat], axis=0)
    both = addcoords(both)
    for blk in ("share0", "share1"):
        both = residual_block(both, params[blk])
    q_feat, ref_feat = both[:n], both[n:]

    _, _, h_f, w_f = q_feat.shape
    hw = h_f * w_f

    theta = conv2d_1x1(q_feat, params["theta_w"], params["theta_b"])  # (n, nl, hw)
    theta = theta - jnp.mean(theta, axis=1, keepdims=True)
    theta = theta / (jnp.sqrt(jnp.sum(theta ** 2, axis=1, keepdims=True)) + EPS)
    theta_t = theta.transpose(0, 2, 1)                                # (n, hw, nl)

    phi = conv2d_1x1(ref_feat, params["phi_w"], params["phi_b"])      # (n, nl, hw)
    phi = phi - jnp.mean(phi, axis=1, keepdims=True)
    phi = phi / (jnp.sqrt(jnp.sum(phi ** 2, axis=1, keepdims=True)) + EPS)

    # Concatenate every "value" matrix (ref image patches + all biggan feature
    # levels) along the channel axis; the fused kernel consumes them all while
    # the correlation matrix stays in VMEM only.
    img_to_warp = unfold_nonoverlap(ref, 4)                 # (n, 48, hw)
    v_parts = [img_to_warp]
    feat_meta = []
    off = img_to_warp.shape[1]
    for k in ref_biggan_feat.keys():
        s = k // h_f  # original: k // 64 with h_f == 64
        f_unf = unfold_nonoverlap(ref_biggan_feat[k], s)    # (n, C*s*s, hw)
        v_parts.append(f_unf)
        feat_meta.append((k, s, off, off + f_unf.shape[1]))
        off += f_unf.shape[1]
    v_all = jnp.concatenate(v_parts, axis=1)                # (n, P, hw)

    warped = pallas_fused_corr_warp(theta_t, phi, v_all, cfg["TEMP"])  # (n, P, hw)

    # Original code folds to a hard-coded 256 (= 4 * 64); here 4 * h_f.
    corr_out["warp_image"] = fold_nonoverlap(
        warped[:, :img_to_warp.shape[1], :], ref.shape[2], 4)
    corr_out["warp_feat"] = {}
    for (k, s, lo, hi) in feat_meta:
        corr_out["warp_feat"][k] = fold_nonoverlap(warped[:, lo:hi, :], s * h_f, s)
    return corr_out


# ----------------------------------------------------------------------------
# Deterministic parameter init (shapes from CorrespondenceNet.__init__)
# ----------------------------------------------------------------------------
def _res_block_params(key, c):
    k1, k2, k3, k4 = jax.random.split(key, 4)
    return {
        "w1": 0.1 * jax.random.normal(k1, (c, c, 3, 3), jnp.float32),
        "b1": 0.01 * jax.random.normal(k2, (c,), jnp.float32),
        "w2": 0.1 * jax.random.normal(k3, (c, c, 3, 3), jnp.float32),
        "b2": 0.01 * jax.random.normal(k4, (c,), jnp.float32),
        "a": jnp.float32(0.25),  # nn.PReLU default init
    }


def init_params(key, feat_nc, nonlocal_nc):
    ks = jax.random.split(key, 8)
    c_sh = feat_nc + 3
    return {
        "private0": _res_block_params(ks[0], feat_nc),
        "private1": _res_block_params(ks[1], feat_nc),
        "share0": _res_block_params(ks[2], c_sh),
        "share1": _res_block_params(ks[3], c_sh),
        "theta_w": 0.1 * jax.random.normal(ks[4], (nonlocal_nc, c_sh, 1, 1), jnp.float32),
        "theta_b": 0.01 * jax.random.normal(ks[5], (nonlocal_nc,), jnp.float32),
        "phi_w": 0.1 * jax.random.normal(ks[6], (nonlocal_nc, c_sh, 1, 1), jnp.float32),
        "phi_b": 0.01 * jax.random.normal(ks[7], (nonlocal_nc,), jnp.float32),
        # cfg.WARP_FEAT is False -> self.val conv is not created / not used.
    }


def make_featnet_stub(key, feat_nc, pool=4):
    # TODO(synk): the real `featnet` is an external pretrained feature extractor;
    # replaced here by a deterministic avg-pool + fixed channel projection.
    wmap = 0.5 * jax.random.normal(key, (feat_nc, 3), jnp.float32)

    def featnet(x, max_inference_depth=None):
        N, C, H, W = x.shape
        xp = x.reshape(N, C, H // pool, pool, W // pool, pool).mean(axis=(3, 5))
        return jnp.einsum("oc,nchw->nohw", wmap, xp)

    return featnet


# ----------------------------------------------------------------------------
if __name__ == "__main__":
    cfg = {
        "FEAT_NC": 4,
        "NONLOCAL_NC": 16,
        "TEMP": 0.01,
        "WARP_FEAT": False,
        "MAX_INFERENCE_DEPTH": 4,
    }

    key = jax.random.PRNGKey(0)
    kp, kf, kq, kqr, kr, kb1, kb2 = jax.random.split(key, 7)

    params = init_params(kp, cfg["FEAT_NC"], cfg["NONLOCAL_NC"])
    featnet = make_featnet_stub(kf, cfg["FEAT_NC"], pool=4)

    # Small shapes: feature grid 8x8 (original is 64x64), image 32x32 (=4*8).
    q = jax.random.normal(kq, (2, 3, 32, 32), jnp.float32)
    q_ref = jax.random.normal(kqr, (2, 3, 32, 32), jnp.float32)   # unused (as in torch)
    ref = jax.random.normal(kr, (2, 3, 32, 32), jnp.float32)
    # ref_biggan_feat keyed by spatial size; s = k // h_f (original k // 64).
    ref_biggan_feat = {
        8: jax.random.normal(kb1, (2, 4, 8, 8), jnp.float32),
        16: jax.random.normal(kb2, (2, 6, 16, 16), jnp.float32),
    }

    out = correspondence_forward(params, cfg, q, q_ref, ref, featnet, ref_biggan_feat)
    out = jax.block_until_ready(out)

    assert out["warp_image"].shape == (2, 3, 32, 32)
    assert out["warp_feat"][8].shape == (2, 4, 8, 8)
    assert out["warp_feat"][16].shape == (2, 6, 16, 16)
    assert bool(jnp.all(jnp.isfinite(out["warp_image"])))
    assert bool(jnp.all(jnp.isfinite(out["warp_feat"][16])))
    print("KERNEL_OK")
</pallas_src>

<mosaic_0001>
module attributes {stable_mosaic.version = 11 : i64} {
  func.func @_channel_matmul_kernel(%arg0: i32, %arg1: i32, %arg2: memref<4x36xf32, #tpu.memory_space<vmem>>, %arg3: memref<4x1xf32, #tpu.memory_space<vmem>>, %arg4: memref<1x36x64xf32, #tpu.memory_space<vmem>>, %arg5: memref<1x4x64xf32, #tpu.memory_space<vmem>>) attributes {dimension_semantics = [#tpu.dimension_semantics<parallel>, #tpu.dimension_semantics<parallel>], iteration_bounds = array<i64: 2, 1>, scalar_prefetch = 0 : i64, scratch_operands = 0 : i64, tpu.core_type = #tpu.core_type<tc>, window_params = [{pipeline_mode = #tpu.pipeline_mode<synchronous>, transform_indices = @transform_0, window_bounds = array<i64: 4, 36>}, {pipeline_mode = #tpu.pipeline_mode<synchronous>, transform_indices = @transform_1, window_bounds = array<i64: 4, 1>}, {transform_indices = @transform_2, window_bounds = array<i64: 1, 36, 64>}, {transform_indices = @transform_3, window_bounds = array<i64: 1, 4, 64>}]} {
    %c0 = arith.constant 0 : index
    %c0_0 = arith.constant 0 : index
    %0 = vector.load %arg2[%c0, %c0_0] : memref<4x36xf32, #tpu.memory_space<vmem>>, vector<4x36xf32>
    %c0_1 = arith.constant 0 : index
    %c0_2 = arith.constant 0 : index
    %c0_3 = arith.constant 0 : index
    %1 = vector.load %arg4[%c0_1, %c0_2, %c0_3] : memref<1x36x64xf32, #tpu.memory_space<vmem>>, vector<1x36x64xf32>
    %2 = vector.shape_cast %1 : vector<1x36x64xf32> to vector<36x64xf32>
    %cst = arith.constant dense<0.000000e+00> : vector<4x64xf32>
    %3 = tpu.matmul %0, %2, %cst {dimension_numbers = #tpu.dot_dimension_numbers<[1], [0], [0], [1], [0, 0, 1, 1], [], []>} : vector<4x36xf32>, vector<36x64xf32>, vector<4x64xf32> -> vector<4x64xf32>
    %c0_4 = arith.constant 0 : index
    %c0_5 = arith.constant 0 : index
    %4 = vector.load %arg3[%c0_4, %c0_5] : memref<4x1xf32, #tpu.memory_space<vmem>>, vector<4x1xf32>
    %5 = vector.broadcast %4 : vector<4x1xf32> to vector<4x64xf32>
    %6 = arith.addf %3, %5 : vector<4x64xf32>
    %c0_6 = arith.constant 0 : index
    %c0_7 = arith.constant 0 : index
    %c0_8 = arith.constant 0 : index
    %7 = vector.load %arg5[%c0_6, %c0_7, %c0_8] : memref<1x4x64xf32, #tpu.memory_space<vmem>>, vector<1x4x64xf32>
    %8 = vector.shape_cast %7 : vector<1x4x64xf32> to vector<4x64xf32>
    %9 = vector.shape_cast %6 : vector<4x64xf32> to vector<1x4x64xf32>
    tpu.vector_store %arg5[%c0_6, %c0_7, %c0_8], %9 {strides = array<i32>} : memref<1x4x64xf32, #tpu.memory_space<vmem>>, vector<1x4x64xf32>,
    return
  }
  func.func @transform_0(%arg0: i32, %arg1: i32) -> (i32, i32) {
    %c0_i32 = arith.constant 0 : i32
    %c0_i32_0 = arith.constant 0 : i32
    %c0_i32_1 = arith.constant 0 : i32
    return %c0_i32, %c0_i32_0 : i32, i32
  }
  func.func @transform_1(%arg0: i32, %arg1: i32) -> (i32, i32) {
    %c0_i32 = arith.constant 0 : i32
    %c0_i32_0 = arith.constant 0 : i32
    %c0_i32_1 = arith.constant 0 : i32
    return %c0_i32, %c0_i32_0 : i32, i32
  }
  func.func @transform_2(%arg0: i32, %arg1: i32) -> (i32, i32, i32) {
    %c0_i32 = arith.constant 0 : i32
    %c0_i32_0 = arith.constant 0 : i32
    return %arg0, %c0_i32, %arg1 : i32, i32, i32
  }
  func.func @transform_3(%arg0: i32, %arg1: i32) -> (i32, i32, i32) {
    %c0_i32 = arith.constant 0 : i32
    %c0_i32_0 = arith.constant 0 : i32
    return %arg0, %c0_i32, %arg1 : i32, i32, i32
  }
}

</mosaic_0001>

<llo_original>
// kernel: tpu_custom_call.1
$region0: #{tpu_custom_call.1}
  #allocation0 [shape = 'u32[]', space=smem, size = 0x4, offset = 0x4, fixed_abs, tag = 'smem constant byte address 0x4 - core index']
  #allocation1 [shape = 'u32[144,128]{1,0:T(1,128)}', space=vmem, size = 0x12000, scoped, tag = 'internal scratch']
  %s0 = inlined_call_operand.vmem [shape: f32[4,36], index: 0, kind: input, shape index: {}]
  %s1 = inlined_call_operand.vmem [shape: f32[4,1], index: 1, kind: input, shape index: {}]
  %s2 = inlined_call_operand.vmem [shape: f32[2,36,64], index: 2, kind: input, shape index: {}]
  %s3 = inlined_call_operand.hbm [shape: f32[2,4,64], index: 3, kind: output, shape index: {}]
  %s4 = sld [smem:[#allocation0]]
  $region45: #{tpu_custom_call.1} parent=0
    _
  %s6 = ssub.s32 1, %s4
  %s7 = scalar_select 0, %s6, %s4
  $region1: #{tpu_custom_call.1} parent=0
    #allocation2 [shape = 'u8[4096]{0}', space=vmem, size = 0x1000, scoped, tag = 'output window, operand 0']
    #allocation3 [shape = 's32[2]{0}', space=sflag, size = 0x8, scoped, tag = 'scoped memory for tpu_custom_call.1']
    %8 = vsyncpa [#allocation3], 0
    %s9 = scalar_lea.sflag [#allocation3], 1
    %10 = vsyncpa %s9, 0
    loop: start=0, step=1, limit=4
    $region2: #{tpu_custom_call.1} parent=1 // loop_pre_header
      _
    $region3: #{tpu_custom_call.1} parent=1 // loop_header
      %s12 = sphi 0, %s16
      %p13 = scmp.ge.s32.totalorder %s12, 4
      %s19 = sphi 0, %s31
      %s20 = sphi 0, %s27
      %s21 = sphi 0, %s19
      %s22 = sphi 0, %s20
      %s23 = sphi 0, %s21
      %s24 = sphi 0, %s22
      %s32 = sphi 0, %s32
      %s34 = sphi 0, %s32
      %s35 = sphi 0, %s34
      %s49 = sphi 0, %s35
      %s53 = sphi 0, %s53
      %s55 = sphi 0, %s53
      %s56 = sphi 0, %s55
      %s70 = sphi 0, %s56
      %s78 = sphi 0, %s80
      %s81 = sphi 0, %s78
      %s82 = sphi 0, %s81
      %s98 = sphi 0, %s82
      %s106 = sphi 0, %s108
      %s109 = sphi 0, %s106
      %s110 = sphi 0, %s109
      %s126 = sphi 0, %s110
    $region4: #{tpu_custom_call.1} parent=1 // loop_header_branch
      %15 = sbr.rel (%p13) target = $region8
    $region5: #{tpu_custom_call.1} parent=1 // loop_body
      %s17 = ssub.s32 %s12, 1
      %s18 = ssub.s32 %s12, 2
      %s25 = sadd.s32 1, %s20
      %p26 = scmp.ge.s32.totalorder %s25, 1
      %s27 = scalar_select %p26, 0, %s25
      %s28 = sadd.s32 1, %s19
      %s29 = scalar_select %p26, %s28, %s19
      %p30 = scmp.ge.s32.totalorder %s29, 2
      %s31 = scalar_select %p30, 0, %s29
      %s33 = sadd.s32 %s32, 1
      %p36 = scmp.eq.s32.totalorder %s12, 1
      %p37 = scmp.ne.s32.totalorder %s32, %s34
      %p38 = scmp.eq.s32.totalorder %s12, 0
      %p39 = por %p37, %p38
      %p40 = scmp.ne.s32.totalorder %s32, %s34
      %p41 = scmp.eq.s32.totalorder %s17, 1
      %p42 = por %p40, %p41
      %p43 = scmp.ne.s32.totalorder %s34, %s35
      %p44 = scmp.eq.s32.totalorder %s17, 0
      %p45 = por %p43, %p44
      %p46 = scmp.ne.s32.totalorder %s34, %s35
      %p47 = scmp.eq.s32.totalorder %s18, 1
      %p48 = por %p46, %p47
      %p50 = scmp.ne.s32.totalorder %s35, %s49
      %p51 = scmp.eq.s32.totalorder %s18, 0
      %p52 = por %p50, %p51
      %s54 = sadd.s32 %s53, 1
      %p57 = scmp.eq.s32.totalorder %s12, 1
      %p58 = scmp.ne.s32.totalorder %s53, %s55
      %p59 = scmp.eq.s32.totalorder %s12, 0
      %p60 = por %p58, %p59
      %p61 = scmp.ne.s32.totalorder %s53, %s55
      %p62 = scmp.eq.s32.totalorder %s17, 1
      %p63 = por %p61, %p62
      %p64 = scmp.ne.s32.totalorder %s55, %s56
      %p65 = scmp.eq.s32.totalorder %s17, 0
      %p66 = por %p64, %p65
      %p67 = scmp.ne.s32.totalorder %s55, %s56
      %p68 = scmp.eq.s32.totalorder %s18, 1
      %p69 = por %p67, %p68
      %p71 = scmp.ne.s32.totalorder %s56, %s70
      %p72 = scmp.eq.s32.totalorder %s18, 0
      %p73 = por %p71, %p72
      %s74 = ssub.s32 %s19, %s31
      %s75 = ssub.s32 %s20, %s27
      %s76 = sor.u32 %s74, %s75
      %p77 = scmp.eq.s32.totalorder %s76, 0
      %s79 = sadd.s32 %s78, 1
      %s80 = scalar_select %p77, %s78, %s79
      %p83 = pneg %p77
      %p84 = scmp.eq.s32.totalorder %s12, 1
      %p85 = por %p83, %p84
      %p86 = scmp.ne.s32.totalorder %s78, %s81
      %p87 = scmp.eq.s32.totalorder %s12, 0
      %p88 = por %p86, %p87
      %p89 = scmp.ne.s32.totalorder %s78, %s81
      %p90 = scmp.eq.s32.totalorder %s17, 1
      %p91 = por %p89, %p90
      %p92 = scmp.ne.s32.totalorder %s81, %s82
      %p93 = scmp.eq.s32.totalorder %s17, 0
      %p94 = por %p92, %p93
      %p95 = scmp.ne.s32.totalorder %s81, %s82
      %p96 = scmp.eq.s32.totalorder %s18, 1
      %p97 = por %p95, %p96
      %p99 = scmp.ne.s32.totalorder %s82, %s98
      %p100 = scmp.eq.s32.totalorder %s18, 0
      %p101 = por %p99, %p100
      %s102 = ssub.s32 %s19, %s31
      %s103 = ssub.s32 %s20, %s27
      %s104 = sor.u32 %s102, %s103
      %p105 = scmp.eq.s32.totalorder %s104, 0
      %s107 = sadd.s32 %s106, 1
      %s108 = scalar_select %p105, %s106, %s107
      %p111 = pneg %p105
      %p112 = scmp.eq.s32.totalorder %s12, 1
      %p113 = por %p111, %p112
      %p114 = scmp.ne.s32.totalorder %s106, %s109
      %p115 = scmp.eq.s32.totalorder %s12, 0
      %p116 = por %p114, %p115
      %p117 = scmp.ne.s32.totalorder %s106, %s109
      %p118 = scmp.eq.s32.totalorder %s17, 1
      %p119 = por %p117, %p118
      %p120 = scmp.ne.s32.totalorder %s109, %s110
      %p121 = scmp.eq.s32.totalorder %s17, 0
      %p122 = por %p120, %p121
      %p123 = scmp.ne.s32.totalorder %s109, %s110
      %p124 = scmp.eq.s32.totalorder %s18, 1
      %p125 = por %p123, %p124
      %p127 = scmp.ne.s32.totalorder %s110, %s126
      %p128 = scmp.eq.s32.totalorder %s18, 0
      %p129 = por %p127, %p128
      %p130 = scmp.le.s32.totalorder 1, %s12
      %p131 = scmp.lt.s32.totalorder %s12, 3
      %p132 = pnand %p130, %p131
      %p133 = pneg %p132
      // Predicated region
      $region9: #{tpu_custom_call.1} parent=5 // pred_check
        _
      $region10: #{tpu_custom_call.1} parent=5 // pred_check_branch
        %135 = sbr.rel (%p132) target = $region12
      $region11: #{tpu_custom_call.1} parent=5 // pred_region
        %s136 = ssub.s32 %s12, 1
        // Predicated region
        $region13: #{tpu_custom_call.1} parent=11 // pred_check
          %p137 = pneg %p45
        $region14: #{tpu_custom_call.1} parent=11 // pred_check_branch
          %139 = sbr.rel (%p137) target = $region16
        $region15: #{tpu_custom_call.1} parent=11 // pred_region
          _
        $region16: #{tpu_custom_call.1} parent=11 // pred_fallthru
          _
        // Predicated region
        $region17: #{tpu_custom_call.1} parent=11 // pred_check
          %p140 = pneg %p66
        $region18: #{tpu_custom_call.1} parent=11 // pred_check_branch
          %142 = sbr.rel (%p140) target = $region20
        $region19: #{tpu_custom_call.1} parent=11 // pred_region
          _
        $region20: #{tpu_custom_call.1} parent=11 // pred_fallthru
          _
      $region12: #{tpu_custom_call.1} parent=5 // pred_fallthru
        _
      %p143 = scmp.lt.s32.totalorder %s12, 2
      // Predicated region
      $region21: #{tpu_custom_call.1} parent=5 // pred_check
        %p144 = pneg %p143
      $region22: #{tpu_custom_call.1} parent=5 // pred_check_branch
        %146 = sbr.rel (%p144) target = $region24
      $region23: #{tpu_custom_call.1} parent=5 // pred_region
        // Predicated region
        $region25: #{tpu_custom_call.1} parent=23 // pred_check
          %p147 = pneg %p88
        $region26: #{tpu_custom_call.1} parent=23 // pred_check_branch
          %149 = sbr.rel (%p147) target = $region28
        $region27: #{tpu_custom_call.1} parent=23 // pred_region
          %p150 = scmp.lt.s32.totalorder %s19, 1
          %s151 = scalar_select %p150, %s19, 1
          %p152 = scmp.lt.s32.totalorder %s20, 0
          %s153 = scalar_select %p152, %s20, 0
          %s154 = smul.addr %s151, 5
          %s155 = sadd.s32 %s153, %s154
          %s156 = smul.addr %s155, 8
          %s157 = scalar_lea.vmem %s2, %s156
        $region28: #{tpu_custom_call.1} parent=23 // pred_fallthru
          _
      $region24: #{tpu_custom_call.1} parent=5 // pred_fallthru
        _
      %p158 = scmp.le.s32.totalorder 1, %s12
      %p159 = scmp.lt.s32.totalorder %s12, 3
      %p160 = pnand %p158, %p159
      %p161 = pneg %p160
      // Predicated region
      $region29: #{tpu_custom_call.1} parent=5 // pred_check
        _
      $region30: #{tpu_custom_call.1} parent=5 // pred_check_branch
        %163 = sbr.rel (%p160) target = $region32
      $region31: #{tpu_custom_call.1} parent=5 // pred_region
        %s164 = ssub.s32 %s12, 1
        %p165 = pneg %p45
        %p166 = pneg %p42
        %p167 = pneg %p66
        %p168 = pneg %p63
        %p169 = scmp.lt.s32.totalorder %s21, 1
        %s170 = scalar_select %p169, %s21, 1
        %p171 = scmp.lt.s32.totalorder %s22, 0
        %s172 = scalar_select %p171, %s22, 0
        %s173 = smul.addr %s170, 5
        %s174 = sadd.s32 %s172, %s173
        %s175 = smul.addr %s174, 8
        %s176 = scalar_lea.vmem %s2, %s175
        %p177 = pneg %p94
        %p178 = pneg %p91
        %p179 = pneg %p122
        %p180 = pneg %p119
        %s181 = sand.u32 %s109, 1
        %s182 = scalar_lea.sflag [#allocation3], %s181
        %s183 = sand.u32 %s109, 1
        %s184 = smul.addr %s183, 4
        %s185 = scalar_lea.vmem [#allocation2], %s184
        %p186 = scmp.lt.s32.totalorder %s21, 1
        %s187 = scalar_select %p186, %s21, 1
        %p188 = scmp.lt.s32.totalorder %s22, 0
        %s189 = scalar_select %p188, %s22, 0
        %s190 = smul.addr %s187, 5
        %s191 = sadd.s32 %s189, %s190
        %s192 = smul.addr %s191, 8
        %s193 = scalar_lea.vmem %s2, %s192
        %v194 = vld [vmem:[%s0] sm:$0xf]
        %v195 = vld [vmem:[%s193] sm:$0xff]
        %v196 = vld [vmem:[%s193 + $0x8] sm:$0xff]
        %v197 = vld [vmem:[%s193 + $0x10] sm:$0xff]
        %v198 = vld [vmem:[%s193 + $0x18] sm:$0xff]
        %v199 = vld [vmem:[%s193 + $0x20] sm:$0xf]
        %v200 = vld [vmem:[%s1] sm:$0xf]
        %202 = vset.pattern.permute.xlu0 0
        %203 = vperm.xlu0 %202, %v200
        %v204 = vpop.permute.xlu0 %203
        %vm206 = vcmask 293888
        %v208 = vsel %vm206, %v194, 0
        %vm210 = vcmask 1043456
        %v212 = vsel %vm210, %v199, 0
        %214 = vmatprep.subr.mxu0 0.0
        %215 = vmatpush1.msra.mxu0 0.0
        %216 = vmatprep.subr.mxu0 0.0
        %217 = vmatpush1.msra.mxu0 0.0
        %218 = vmatprep.subr.mxu0 0.0
        %219 = vmatpush1.msra.mxu0 0.0
        %220 = vmatprep.subr.mxu0 0.0
        %221 = vmatpush1.msra.mxu0 0.0
        %222 = vmatprep.subr.mxu0 0.0
        %223 = vmatpush1.msra.mxu0 0.0
        %224 = vmatprep.subr.mxu0 0.0
        %225 = vmatpush1.msra.mxu0 0.0
        %226 = vmatprep.subr.mxu0 0.0
        %227 = vmatpush1.msra.mxu0 0.0
        %228 = vmatprep.subr.mxu0 0.0
        %229 = vmatpush1.msra.mxu0 0.0
        %230 = vmatprep.subr.mxu0 0.0
        %231 = vmatpush1.msra.mxu0 0.0
        %232 = vmatprep.subr.mxu0 0.0
        %233 = vmatpush1.msra.mxu0 0.0
        %234 = vmatprep.subr.mxu0 0.0
        %235 = vmatpush1.msra.mxu0 0.0
        %236 = vmatprep.subr.mxu0 0.0
        %237 = vmatpush1.msra.mxu0 %v212
        %238 = vmatprep.subr.mxu0 0.0
        %239 = vmatpush1.msra.mxu0 %v198
        %240 = vmatprep.subr.mxu0 0.0
        %241 = vmatpush1.msra.mxu0 %v197
        %242 = vmatprep.subr.mxu0 0.0
        %243 = vmatpush1.msra.mxu0 %v196
        %244 = vmatprep.subr.mxu0 0.0
        %245 = vmatpush1.msra.mxu0 %v195
        %246 = vmatprep.subr.mxu0 0.0
        %247 = vmatpush2.msra.mxu0 0.0
        %248 = vmatprep.subr.mxu0 0.0
        %249 = vmatpush2.msra.mxu0 0.0
        %250 = vmatprep.subr.mxu0 0.0
        %251 = vmatpush2.msra.mxu0 0.0
        %252 = vmatprep.subr.mxu0 0.0
        %253 = vmatpush2.msra.mxu0 0.0
        %254 = vmatprep.subr.mxu0 0.0
        %255 = vmatpush2.msra.mxu0 0.0
        %256 = vmatprep.subr.mxu0 0.0
        %257 = vmatpush2.msra.mxu0 0.0
        %258 = vmatprep.subr.mxu0 0.0
        %259 = vmatpush2.msra.mxu0 0.0
        %260 = vmatprep.subr.mxu0 0.0
        %261 = vmatpush2.msra.mxu0 0.0
        %262 = vmatprep.subr.mxu0 0.0
        %263 = vmatpush2.msra.mxu0 0.0
        %264 = vmatprep.subr.mxu0 0.0
        %265 = vmatpush2.msra.mxu0 0.0
        %266 = vmatprep.subr.mxu0 0.0
        %267 = vmatpush2.msra.mxu0 0.0
        %268 = vmatprep.subr.mxu0 0.0
        %269 = vmatpush2.msra.mxu0 0.0
        %270 = vmatprep.subr.mxu0 0.0
        %271 = vmatpush2.msra.mxu0 0.0
        %272 = vmatprep.subr.mxu0 0.0
        %273 = vmatpush2.msra.mxu0 0.0
        %274 = vmatprep.subr.mxu0 0.0
        %275 = vmatpush2.msra.mxu0 0.0
        %276 = vmatprep.subr.mxu0 0.0
        %277 = vmatpush2.msra.mxu0 0.0
        %278 = vmatprep.mubr.f32.mxu0 0.0
        %279 = vmatmul.mubr.f32.gmra.mxu0 %v208
        %v280 = vpop.f32.mrf.mxu0
        %v281 = vadd.f32 %v204, %v280
        %v282 = vpop.f32.mrf.mxu0
        %283 = vdwg.mxu0
        %vm284 = vcmask 519168
        %285 = vst.msk [vmem:[%s185] sm:$0xf] %vm284, %v281
        %s286 = sand.u32 %s109, 1
        %s287 = scalar_lea.sflag [#allocation3], %s286
        %s288 = sand.u32 %s109, 1
        %s289 = smul.addr %s288, 4
        %s290 = scalar_lea.vmem [#allocation2], %s289
        // Predicated region
        $region33: #{tpu_custom_call.1} parent=31 // pred_check
          %p291 = pneg %p119
        $region34: #{tpu_custom_call.1} parent=31 // pred_check_branch
          %293 = sbr.rel (%p291) target = $region36
        $region35: #{tpu_custom_call.1} parent=31 // pred_region
          %s295 = ssub.s32 64, 64
          %296 = vsyncadd %s287, %s295
          %s297 = sadd.s32 %s22, %s21
          %s298 = smul.addr %s297, 64
          %s299 = scalar_lea.hbm %s3, %s298
          %s301 = sshll.u32 %s290, 4
          %s302 = int_to_ptr.vmem [resolvable:$true] %s301
          %304 = dma.vmem_to_hbm [thread:$0]  %s302, 64, %s299, %s287
        $region36: #{tpu_custom_call.1} parent=31 // pred_fallthru
          _
      $region32: #{tpu_custom_call.1} parent=5 // pred_fallthru
        _
      %p305 = scmp.le.s32.totalorder 2, %s12
      // Predicated region
      $region37: #{tpu_custom_call.1} parent=5 // pred_check
        %p306 = pneg %p305
      $region38: #{tpu_custom_call.1} parent=5 // pred_check_branch
        %308 = sbr.rel (%p306) target = $region40
      $region39: #{tpu_custom_call.1} parent=5 // pred_region
        %s309 = ssub.s32 %s12, 2
        // Predicated region
        $region41: #{tpu_custom_call.1} parent=39 // pred_check
          %p310 = pneg %p125
        $region42: #{tpu_custom_call.1} parent=39 // pred_check_branch
          %312 = sbr.rel (%p310) target = $region44
        $region43: #{tpu_custom_call.1} parent=39 // pred_region
          %s313 = sand.u32 %s110, 1
          %s314 = scalar_lea.sflag [#allocation3], %s313
          %s315 = sand.u32 %s110, 1
          %s316 = smul.addr %s315, 4
          %s317 = scalar_lea.vmem [#allocation2], %s316
          %318 = dma.done %s314, 64
        $region44: #{tpu_custom_call.1} parent=39 // pred_fallthru
          _
      $region40: #{tpu_custom_call.1} parent=5 // pred_fallthru
        _
    $region6: #{tpu_custom_call.1} parent=1 // loop_footer
      %s16 = sadd.s32 1, %s12
    $region7: #{tpu_custom_call.1} parent=1 // loop_footer_branch
      %11 = sbr.rel target = $region3
    $region8: #{tpu_custom_call.1} parent=1 // loop_exit
      _
    %319 = vsyncpa [#allocation3], 1
    %s320 = scalar_lea.sflag [#allocation3], 1
    %321 = vsyncpa %s320, 1

</llo_original>
